<compile_context>
chip_gen: v7x
topology: tpu7x:2x2x1
jax: 0.10.0
libtpu: 0.0.40
codegen_flags: <defaults>
</compile_context>

<pallas_src>
import functools

import jax
import jax.numpy as jnp
from jax import lax
from jax.experimental import pallas as pl
from jax.experimental.pallas import tpu as pltpu

LEAKY_SLOPE = 0.01     # PyTorch nn.LeakyReLU default negative_slope
_UNROLL_LIMIT = 16     # beyond this, use a visible fori_loop instead of full unroll


def _round_up(n, m):
    return ((n + m - 1) // m) * m


def _net_kernel(x_ref, w_ref, b_ref, o_ref, xp_ref, *, process_length, B, D):
    """Grid-less invocation; everything resident in VMEM.

    x_ref : (B, D)   f32  unpadded activations (full-array BlockSpec)
    w_ref : (Dp, Dp) f32  PyTorch (out, in) weight, zero-padded once at init
    b_ref : (1, Dp)  f32  bias, zero-padded once at init
    o_ref : (B, D)   f32  output (unpadded)
    xp_ref: (Bp, Dp) f32  VMEM scratch -- aligned working buffer
    """
    Bp, Dp = xp_ref.shape

    # Zero-fill the aligned working buffer, then drop the real rows/cols in.
    # Zero padding is exactly preserved by the recurrence: padded weight
    # rows/cols and padded bias entries are zero, and leaky_relu(0) == 0.
    xp_ref[...] = jnp.zeros_like(xp_ref)
    xp_ref[0:B, 0:D] = x_ref[...]

    # bf16 MXU operands: single-pass matmul on v5e/v6e/v7x; accumulation,
    # bias-add and LeakyReLU stay in f32.  (W is loop-invariant; Mosaic can
    # keep the staged weight resident across the unrolled iterations.)
    w = w_ref[...].astype(jnp.bfloat16)

    # Hoist the bias broadcast out of the loop (no per-iteration broadcast).
    b = jnp.broadcast_to(b_ref[...], (Bp, Dp))

    # x @ W^T  ==  contract x axis 1 against weight axis 1 (no transpose).
    dnums = (((1,), (1,)), ((), ()))

    def step(x):
        y = lax.dot_general(x.astype(jnp.bfloat16), w, dnums,
                            preferred_element_type=jnp.float32) + b
        # LeakyReLU via max (valid for 0 < slope < 1): mul + max, no select.
        return jnp.maximum(y, LEAKY_SLOPE * y)

    x = xp_ref[...]
    if process_length <= _UNROLL_LIMIT:
        # Short, serially dependent recurrence: full static unroll.
        for _ in range(process_length):
            x = step(x)
    else:
        # Long recurrence: visible loop bounds live ranges / compile time.
        x = lax.fori_loop(0, process_length, lambda _, xx: step(xx), x, unroll=4)

    o_ref[...] = x[0:B, 0:D].astype(o_ref.dtype)


def prepare_params(weight, bias):
    """One-time, init-side padding of the loop-invariant parameters.

    weight: (D, D) f32 PyTorch nn.Linear weight (out_features, in_features)
    bias:   (D,)   f32
    """
    D = weight.shape[0]
    Dp = _round_up(max(D, 128), 128)
    w_p = jnp.pad(weight, ((0, Dp - D), (0, Dp - D)))
    b_p = jnp.pad(bias, (0, Dp - D)).reshape(1, Dp)
    return w_p, b_p


def make_net_forward(batch, d, process_length):
    """Builds the forward callable.  x is passed UNPADDED: no per-call pad/slice HLOs."""
    Bp = _round_up(max(batch, 8), 8)
    Dp = _round_up(max(d, 128), 128)

    kernel = functools.partial(_net_kernel, process_length=int(process_length),
                               B=batch, D=d)

    # Scaling notes (resident-weight design):
    #  * v5e scoped-VMEM default 16 MiB, v6e/v7x 32 MiB (v7x only 64 MiB
    #    physical): once 4*Dp^2 approaches those limits, raise
    #    pltpu.CompilerParams(vmem_limit_bytes=...) or switch to a K/N-tiled
    #    grid with BlockSpec pipelining.
    #  * TODO(synk): for large batches on v7x, add a batch grid axis with
    #    dimension_semantics=("parallel",) so both TensorCores share the rows.
    fwd = pl.pallas_call(
        kernel,
        out_shape=jax.ShapeDtypeStruct((batch, d), jnp.float32),
        in_specs=[
            pl.BlockSpec(memory_space=pltpu.MemorySpace.VMEM),  # x (unpadded)
            pl.BlockSpec(memory_space=pltpu.MemorySpace.VMEM),  # padded weight
            pl.BlockSpec(memory_space=pltpu.MemorySpace.VMEM),  # padded bias
        ],
        out_specs=pl.BlockSpec(memory_space=pltpu.MemorySpace.VMEM),
        scratch_shapes=[pltpu.VMEM((Bp, Dp), jnp.float32)],
    )
    return jax.jit(fwd)


def init_linear_params(key, in_features, out_features):
    """Deterministic init matching nn.Linear default: U(-1/sqrt(fan_in), 1/sqrt(fan_in))."""
    kw, kb = jax.random.split(key)
    bound = 1.0 / jnp.sqrt(jnp.float32(in_features))
    weight = jax.random.uniform(kw, (out_features, in_features), jnp.float32,
                                minval=-bound, maxval=bound)
    bias = jax.random.uniform(kb, (out_features,), jnp.float32,
                              minval=-bound, maxval=bound)
    return weight, bias


def reference_forward(x, weight, bias, process_length):
    """Pure-JAX fp32 reference matching the PyTorch forward semantics."""
    for _ in range(process_length):
        y = jnp.dot(x, weight.T, precision=lax.Precision.HIGHEST) + bias
        x = jnp.where(y >= 0, y, LEAKY_SLOPE * y)
    return x


if __name__ == "__main__":
    # Module hyper-parameters (small, consistent with the PyTorch Net)
    input_size = 24
    hidden_size = 8
    process_length = 3
    D = input_size + hidden_size          # fc: Linear(D, D) -> D = 32
    batch = 8

    key = jax.random.PRNGKey(0)
    k_x, k_p = jax.random.split(key)
    x = jax.random.normal(k_x, (batch, D), jnp.float32)
    weight, bias = init_linear_params(k_p, D, D)

    w_p, b_p = prepare_params(weight, bias)       # one-time init-side padding
    net_forward = make_net_forward(batch, D, process_length)

    out = net_forward(x, w_p, b_p)
    out = jax.block_until_ready(out)

    ref = reference_forward(x, weight, bias, process_length)
    assert out.shape == (batch, D)
    # bf16 MXU operands (intentional) -> compare against the strict fp32
    # reference at a tolerance covering bf16 rounding over the 3-step recurrence.
    assert jnp.allclose(out, ref, atol=5e-2, rtol=5e-2), "mismatch vs reference"

    # TODO(synk): forwardBatch / backward (Adam, MSELoss, grad clipping) and
    # save/load are host-side training utilities, not kernel work.

    print("KERNEL_OK")
</pallas_src>

<mosaic_0001>
module attributes {stable_mosaic.version = 11 : i64} {
  func.func @_net_kernel(%arg0: memref<8x32xf32, #tpu.memory_space<vmem>>, %arg1: memref<128x128xf32, #tpu.memory_space<vmem>>, %arg2: memref<1x128xf32, #tpu.memory_space<vmem>>, %arg3: memref<8x32xf32, #tpu.memory_space<vmem>>, %arg4: memref<8x128xf32, #tpu.memory_space<vmem>>) attributes {dimension_semantics = [], scalar_prefetch = 0 : i64, scratch_operands = 1 : i64, tpu.core_type = #tpu.core_type<tc>} {
    %cst = arith.constant 0.000000e+00 : f32
    %0 = vector.broadcast %cst : f32 to vector<8x128xf32>
    %c0 = arith.constant 0 : index
    %c0_0 = arith.constant 0 : index
    %1 = vector.load %arg4[%c0, %c0_0] : memref<8x128xf32, #tpu.memory_space<vmem>>, vector<8x128xf32>
    tpu.vector_store %arg4[%c0, %c0_0], %0 {strides = array<i32>} : memref<8x128xf32, #tpu.memory_space<vmem>>, vector<8x128xf32>,
    %c0_1 = arith.constant 0 : index
    %c0_2 = arith.constant 0 : index
    %2 = vector.load %arg0[%c0_1, %c0_2] : memref<8x32xf32, #tpu.memory_space<vmem>>, vector<8x32xf32>
    %c0_3 = arith.constant 0 : index
    %c0_4 = arith.constant 0 : index
    %3 = vector.load %arg4[%c0_3, %c0_4] : memref<8x128xf32, #tpu.memory_space<vmem>>, vector<8x32xf32>
    tpu.vector_store %arg4[%c0_3, %c0_4], %2 {strides = array<i32>} : memref<8x128xf32, #tpu.memory_space<vmem>>, vector<8x32xf32>,
    %c0_5 = arith.constant 0 : index
    %c0_6 = arith.constant 0 : index
    %4 = vector.load %arg1[%c0_5, %c0_6] : memref<128x128xf32, #tpu.memory_space<vmem>>, vector<128x128xf32>
    %5 = arith.truncf %4 : vector<128x128xf32> to vector<128x128xbf16>
    %c0_7 = arith.constant 0 : index
    %c0_8 = arith.constant 0 : index
    %6 = vector.load %arg2[%c0_7, %c0_8] : memref<1x128xf32, #tpu.memory_space<vmem>>, vector<1x128xf32>
    %7 = vector.shape_cast %6 : vector<1x128xf32> to vector<1x128xf32>
    %8 = vector.broadcast %7 : vector<1x128xf32> to vector<8x128xf32>
    %c0_9 = arith.constant 0 : index
    %c0_10 = arith.constant 0 : index
    %9 = vector.load %arg4[%c0_9, %c0_10] : memref<8x128xf32, #tpu.memory_space<vmem>>, vector<8x128xf32>
    %10 = arith.truncf %9 : vector<8x128xf32> to vector<8x128xbf16>
    %cst_11 = arith.constant dense<0.000000e+00> : vector<8x128xf32>
    %11 = tpu.matmul %10, %5, %cst_11 {dimension_numbers = #tpu.dot_dimension_numbers<[1], [1], [0], [0], [0, 0, 1, 0], [], []>} : vector<8x128xbf16>, vector<128x128xbf16>, vector<8x128xf32> -> vector<8x128xf32>
    %12 = arith.addf %11, %8 : vector<8x128xf32>
    %cst_12 = arith.constant 0.00999999977 : f32
    %13 = vector.broadcast %cst_12 : f32 to vector<8x128xf32>
    %14 = arith.mulf %13, %12 : vector<8x128xf32>
    %15 = arith.maximumf %12, %14 : vector<8x128xf32>
    %16 = arith.truncf %15 : vector<8x128xf32> to vector<8x128xbf16>
    %cst_13 = arith.constant dense<0.000000e+00> : vector<8x128xf32>
    %17 = tpu.matmul %16, %5, %cst_13 {dimension_numbers = #tpu.dot_dimension_numbers<[1], [1], [0], [0], [0, 0, 1, 0], [], []>} : vector<8x128xbf16>, vector<128x128xbf16>, vector<8x128xf32> -> vector<8x128xf32>
    %18 = arith.addf %17, %8 : vector<8x128xf32>
    %cst_14 = arith.constant 0.00999999977 : f32
    %19 = vector.broadcast %cst_14 : f32 to vector<8x128xf32>
    %20 = arith.mulf %19, %18 : vector<8x128xf32>
    %21 = arith.maximumf %18, %20 : vector<8x128xf32>
    %22 = arith.truncf %21 : vector<8x128xf32> to vector<8x128xbf16>
    %cst_15 = arith.constant dense<0.000000e+00> : vector<8x128xf32>
    %23 = tpu.matmul %22, %5, %cst_15 {dimension_numbers = #tpu.dot_dimension_numbers<[1], [1], [0], [0], [0, 0, 1, 0], [], []>} : vector<8x128xbf16>, vector<128x128xbf16>, vector<8x128xf32> -> vector<8x128xf32>
    %24 = arith.addf %23, %8 : vector<8x128xf32>
    %cst_16 = arith.constant 0.00999999977 : f32
    %25 = vector.broadcast %cst_16 : f32 to vector<8x128xf32>
    %26 = arith.mulf %25, %24 : vector<8x128xf32>
    %27 = arith.maximumf %24, %26 : vector<8x128xf32>
    %28 = vector.extract_strided_slice %27 {offsets = [0, 0], sizes = [8, 32], strides = [1, 1]} : vector<8x128xf32> to vector<8x32xf32>
    %c0_17 = arith.constant 0 : index
    %c0_18 = arith.constant 0 : index
    %29 = vector.load %arg3[%c0_17, %c0_18] : memref<8x32xf32, #tpu.memory_space<vmem>>, vector<8x32xf32>
    tpu.vector_store %arg3[%c0_17, %c0_18], %28 {strides = array<i32>} : memref<8x32xf32, #tpu.memory_space<vmem>>, vector<8x32xf32>,
    return
  }
}

</mosaic_0001>

<llo_original>
// kernel: tpu_custom_call.1
$region0: #{tpu_custom_call.1}
  #allocation0 [shape = 'u32[]', space=smem, size = 0x4, offset = 0x4, fixed_abs, tag = 'smem constant byte address 0x4 - core index']
  #allocation1 [shape = 'u32[144,128]{1,0:T(1,128)}', space=vmem, size = 0x12000, scoped, tag = 'internal scratch']
  #allocation2 [shape = 'f32[8,128]{1,0:T(8,128)}', space=vmem, size = 0x1000, scoped, tag = 'scratch operand']
  %s0 = inlined_call_operand.hbm [shape: f32[8,32], index: 0, kind: input, shape index: {}]
  %s1 = inlined_call_operand.hbm [shape: f32[128,128], index: 1, kind: input, shape index: {}]
  %s2 = inlined_call_operand.vmem [shape: f32[1,128], index: 2, kind: input, shape index: {}]
  %s3 = inlined_call_operand.hbm [shape: f32[8,32], index: 3, kind: output, shape index: {}]
  %s4 = sld [smem:[#allocation0]]
  $region30: #{tpu_custom_call.1} parent=0
    _
  %s6 = ssub.s32 1, %s4
  %s7 = scalar_select 0, %s6, %s4
  $region1: #{tpu_custom_call.1} parent=0
    #allocation3 [shape = 'u8[4096]{0}', space=vmem, size = 0x1000, scoped, tag = 'input window, operand 0, single buffered']
    #allocation4 [shape = 's32[1]{0}', space=sflag, size = 0x4, scoped, tag = 'scoped memory for tpu_custom_call.1']
    #allocation5 [shape = 's32[1]{0}', space=sflag, size = 0x4, scoped, tag = 'scoped memory for tpu_custom_call.1']
    #allocation6 [shape = 'u8[65536]{0}', space=vmem, size = 0x10000, scoped, tag = 'input window, operand 1, single buffered']
    #allocation7 [shape = 's32[1]{0}', space=sflag, size = 0x4, scoped, tag = 'scoped memory for tpu_custom_call.1']
    #allocation8 [shape = 'u8[4096]{0}', space=vmem, size = 0x1000, scoped, tag = 'output window, operand 0, single buffered']
    %8 = vsyncpa [#allocation4], 0
    %9 = vsyncpa [#allocation7], 0
    %10 = vsyncpa [#allocation5], 0
    // Predicated region
    $region2: #{tpu_custom_call.1} parent=1 // pred_check
      _
    $region3: #{tpu_custom_call.1} parent=1 // pred_check_branch
      %12 = sbr.rel (0) target = $region5
    $region4: #{tpu_custom_call.1} parent=1 // pred_region
      %s14 = ssub.s32 128, 128
      %15 = vsyncadd [#allocation4], %s14
      %s17 = sshll.u32 [#allocation3], 4
      %s18 = int_to_ptr.vmem [resolvable:$true] %s17
      %20 = dma.hbm_to_vmem [thread:$0]  %s0, 128, %s18, [#allocation4]
    $region5: #{tpu_custom_call.1} parent=1 // pred_fallthru
      _
    // Predicated region
    $region6: #{tpu_custom_call.1} parent=1 // pred_check
      _
    $region7: #{tpu_custom_call.1} parent=1 // pred_check_branch
      %22 = sbr.rel (0) target = $region9
    $region8: #{tpu_custom_call.1} parent=1 // pred_region
      %s24 = ssub.s32 2048, 2048
      %25 = vsyncadd [#allocation7], %s24
      %s26 = sshll.u32 [#allocation6], 4
      %s27 = int_to_ptr.vmem [resolvable:$true] %s26
      %32 = dma.hbm_to_vmem [thread:$0]  %s1, 2048, %s27, [#allocation7], 128, 128, 8
    $region9: #{tpu_custom_call.1} parent=1 // pred_fallthru
      _
    // Predicated region
    $region10: #{tpu_custom_call.1} parent=1 // pred_check
      _
    $region11: #{tpu_custom_call.1} parent=1 // pred_check_branch
      %34 = sbr.rel (0) target = $region13
    $region12: #{tpu_custom_call.1} parent=1 // pred_region
      _
    $region13: #{tpu_custom_call.1} parent=1 // pred_fallthru
      _
    // Predicated region
    $region14: #{tpu_custom_call.1} parent=1 // pred_check
      _
    $region15: #{tpu_custom_call.1} parent=1 // pred_check_branch
      %36 = sbr.rel (0) target = $region17
    $region16: #{tpu_custom_call.1} parent=1 // pred_region
      %37 = dma.done [#allocation4], 128
    $region17: #{tpu_custom_call.1} parent=1 // pred_fallthru
      _
    // Predicated region
    $region18: #{tpu_custom_call.1} parent=1 // pred_check
      _
    $region19: #{tpu_custom_call.1} parent=1 // pred_check_branch
      %39 = sbr.rel (0) target = $region21
    $region20: #{tpu_custom_call.1} parent=1 // pred_region
      %40 = dma.done [#allocation7], 2048
    $region21: #{tpu_custom_call.1} parent=1 // pred_fallthru
      _
    %42 = vst [vmem:[#allocation2] sm:$0xff] 0.0
    %v43 = vld [vmem:[#allocation3] sm:$0xff]
    %vm44 = vcmask 261120
    %45 = vst.msk [vmem:[#allocation2] sm:$0xff] %vm44, %v43
    %v46 = vld [vmem:[#allocation6] sm:$0xff]
    %v47 = vld [vmem:[#allocation6 + $0x8] sm:$0xff]
    %v48 = vld [vmem:[#allocation6 + $0x10] sm:$0xff]
    %v49 = vld [vmem:[#allocation6 + $0x18] sm:$0xff]
    %v50 = vld [vmem:[#allocation6 + $0x20] sm:$0xff]
    %v51 = vld [vmem:[#allocation6 + $0x28] sm:$0xff]
    %v52 = vld [vmem:[#allocation6 + $0x30] sm:$0xff]
    %v53 = vld [vmem:[#allocation6 + $0x38] sm:$0xff]
    %v54 = vld [vmem:[#allocation6 + $0x40] sm:$0xff]
    %v55 = vld [vmem:[#allocation6 + $0x48] sm:$0xff]
    %v56 = vld [vmem:[#allocation6 + $0x50] sm:$0xff]
    %v57 = vld [vmem:[#allocation6 + $0x58] sm:$0xff]
    %v58 = vld [vmem:[#allocation6 + $0x60] sm:$0xff]
    %v59 = vld [vmem:[#allocation6 + $0x68] sm:$0xff]
    %v60 = vld [vmem:[#allocation6 + $0x70] sm:$0xff]
    %v61 = vld [vmem:[#allocation6 + $0x78] sm:$0xff]
    %v62 = vpack.c.bf16 %v47, %v46
    %v63 = vpack.c.bf16 %v49, %v48
    %v64 = vpack.c.bf16 %v51, %v50
    %v65 = vpack.c.bf16 %v53, %v52
    %v66 = vpack.c.bf16 %v55, %v54
    %v67 = vpack.c.bf16 %v57, %v56
    %v68 = vpack.c.bf16 %v59, %v58
    %v69 = vpack.c.bf16 %v61, %v60
    %v70 = vld [vmem:[%s2] sm:$0x1]
    %v72 = vlaneseq
    %v73 = vshrl.u32 %v72, 7
    %v74 = vsub.s32 0, %v73
    %v75 = vrot.slane %v70, %v74
    %v77 = vld [vmem:[#allocation2] sm:$0xff]
    %v78 = vpack.c.bf16 %v77, %v77
    %79 = vmatprep.subr.bf16.mxu0 0
    %80 = vmatpush1.bf16.xpose.msra.mxu0 %v62
    %81 = vmatprep.subr.bf16.mxu0 0
    %82 = vmatpush1.bf16.xpose.msra.mxu0 %v63
    %83 = vmatprep.subr.bf16.mxu0 0
    %84 = vmatpush1.bf16.xpose.msra.mxu0 %v64
    %85 = vmatprep.subr.bf16.mxu0 0
    %86 = vmatpush1.bf16.xpose.msra.mxu0 %v65
    %87 = vmatprep.subr.bf16.mxu0 0
    %88 = vmatpush1.bf16.xpose.msra.mxu0 %v66
    %89 = vmatprep.subr.bf16.mxu0 0
    %90 = vmatpush1.bf16.xpose.msra.mxu0 %v67
    %91 = vmatprep.subr.bf16.mxu0 0
    %92 = vmatpush1.bf16.xpose.msra.mxu0 %v68
    %93 = vmatprep.subr.bf16.mxu0 0
    %94 = vmatpush1.bf16.xpose.msra.mxu0 %v69
    %95 = vmatprep.subr.bf16.mxu0 0
    %96 = vmatpush1.bf16.xpose.msra.mxu0 0
    %97 = vmatprep.subr.bf16.mxu0 0
    %98 = vmatpush1.bf16.xpose.msra.mxu0 0
    %99 = vmatprep.subr.bf16.mxu0 0
    %100 = vmatpush1.bf16.xpose.msra.mxu0 0
    %101 = vmatprep.subr.bf16.mxu0 0
    %102 = vmatpush1.bf16.xpose.msra.mxu0 0
    %103 = vmatprep.subr.bf16.mxu0 0
    %104 = vmatpush1.bf16.xpose.msra.mxu0 0
    %105 = vmatprep.subr.bf16.mxu0 0
    %106 = vmatpush1.bf16.xpose.msra.mxu0 0
    %107 = vmatprep.subr.bf16.mxu0 0
    %108 = vmatpush1.bf16.xpose.msra.mxu0 0
    %109 = vmatprep.subr.bf16.mxu0 0
    %110 = vmatpush1.bf16.xpose.msra.mxu0 0
    %111 = vmatprep.mubr.bf16.mxu0 0
    %112 = vmatmul.mubr.bf16.gmra.mrb[0].mxu0 %v78
    %v113 = vpop.f32.mrb[0].mxu0
    %v114 = vadd.f32 %v75, %v113
    %v115 = vpop.f32.mrb[0].mxu0
    %v116 = vpop.f32.mrb[0].mxu0
    %v117 = vpop.f32.mrb[0].mxu0
    %118 = vdwg.mxu0
    %v119 = vmul.f32 %v114, 0.01
    %v120 = vmax.f32 %v114, %v119
    %v121 = vpack.c.bf16 %v120, %v120
    %122 = vmatprep.subr.bf16.mxu0 0
    %123 = vmatpush1.bf16.xpose.msra.mxu0 %v62
    %124 = vmatprep.subr.bf16.mxu0 0
    %125 = vmatpush1.bf16.xpose.msra.mxu0 %v63
    %126 = vmatprep.subr.bf16.mxu0 0
    %127 = vmatpush1.bf16.xpose.msra.mxu0 %v64
    %128 = vmatprep.subr.bf16.mxu0 0
    %129 = vmatpush1.bf16.xpose.msra.mxu0 %v65
    %130 = vmatprep.subr.bf16.mxu0 0
    %131 = vmatpush1.bf16.xpose.msra.mxu0 %v66
    %132 = vmatprep.subr.bf16.mxu0 0
    %133 = vmatpush1.bf16.xpose.msra.mxu0 %v67
    %134 = vmatprep.subr.bf16.mxu0 0
    %135 = vmatpush1.bf16.xpose.msra.mxu0 %v68
    %136 = vmatprep.subr.bf16.mxu0 0
    %137 = vmatpush1.bf16.xpose.msra.mxu0 %v69
    %138 = vmatprep.subr.bf16.mxu0 0
    %139 = vmatpush1.bf16.xpose.msra.mxu0 0
    %140 = vmatprep.subr.bf16.mxu0 0
    %141 = vmatpush1.bf16.xpose.msra.mxu0 0
    %142 = vmatprep.subr.bf16.mxu0 0
    %143 = vmatpush1.bf16.xpose.msra.mxu0 0
    %144 = vmatprep.subr.bf16.mxu0 0
    %145 = vmatpush1.bf16.xpose.msra.mxu0 0
    %146 = vmatprep.subr.bf16.mxu0 0
    %147 = vmatpush1.bf16.xpose.msra.mxu0 0
    %148 = vmatprep.subr.bf16.mxu0 0
    %149 = vmatpush1.bf16.xpose.msra.mxu0 0
    %150 = vmatprep.subr.bf16.mxu0 0
    %151 = vmatpush1.bf16.xpose.msra.mxu0 0
    %152 = vmatprep.subr.bf16.mxu0 0
    %153 = vmatpush1.bf16.xpose.msra.mxu0 0
    %154 = vmatprep.mubr.bf16.mxu0 0
    %155 = vmatmul.mubr.bf16.gmra.mrb[0].mxu0 %v121
    %v156 = vpop.f32.mrb[0].mxu0
    %v157 = vadd.f32 %v75, %v156
    %v158 = vpop.f32.mrb[0].mxu0
    %v159 = vpop.f32.mrb[0].mxu0
    %v160 = vpop.f32.mrb[0].mxu0
    %161 = vdwg.mxu0
    %v162 = vmul.f32 %v157, 0.01
    %v163 = vmax.f32 %v157, %v162
    %v164 = vpack.c.bf16 %v163, %v163
    %165 = vmatprep.subr.bf16.mxu0 0
    %166 = vmatpush1.bf16.xpose.msra.mxu0 %v62
    %167 = vmatprep.subr.bf16.mxu0 0
    %168 = vmatpush1.bf16.xpose.msra.mxu0 %v63
    %169 = vmatprep.subr.bf16.mxu0 0
    %170 = vmatpush1.bf16.xpose.msra.mxu0 %v64
    %171 = vmatprep.subr.bf16.mxu0 0
    %172 = vmatpush1.bf16.xpose.msra.mxu0 %v65
    %173 = vmatprep.subr.bf16.mxu0 0
    %174 = vmatpush1.bf16.xpose.msra.mxu0 %v66
    %175 = vmatprep.subr.bf16.mxu0 0
    %176 = vmatpush1.bf16.xpose.msra.mxu0 %v67
    %177 = vmatprep.subr.bf16.mxu0 0
    %178 = vmatpush1.bf16.xpose.msra.mxu0 %v68
    %179 = vmatprep.subr.bf16.mxu0 0
    %180 = vmatpush1.bf16.xpose.msra.mxu0 %v69
    %181 = vmatprep.subr.bf16.mxu0 0
    %182 = vmatpush1.bf16.xpose.msra.mxu0 0
    %183 = vmatprep.subr.bf16.mxu0 0
    %184 = vmatpush1.bf16.xpose.msra.mxu0 0
    %185 = vmatprep.subr.bf16.mxu0 0
    %186 = vmatpush1.bf16.xpose.msra.mxu0 0
    %187 = vmatprep.subr.bf16.mxu0 0
    %188 = vmatpush1.bf16.xpose.msra.mxu0 0
    %189 = vmatprep.subr.bf16.mxu0 0
    %190 = vmatpush1.bf16.xpose.msra.mxu0 0
    %191 = vmatprep.subr.bf16.mxu0 0
    %192 = vmatpush1.bf16.xpose.msra.mxu0 0
    %193 = vmatprep.subr.bf16.mxu0 0
    %194 = vmatpush1.bf16.xpose.msra.mxu0 0
    %195 = vmatprep.subr.bf16.mxu0 0
    %196 = vmatpush1.bf16.xpose.msra.mxu0 0
    %197 = vmatprep.mubr.bf16.mxu0 0
    %198 = vmatmul.mubr.bf16.gmra.mrb[0].mxu0 %v164
    %v199 = vpop.f32.mrb[0].mxu0
    %v200 = vadd.f32 %v75, %v199
    %v201 = vpop.f32.mrb[0].mxu0
    %v202 = vpop.f32.mrb[0].mxu0
    %v203 = vpop.f32.mrb[0].mxu0
    %204 = vdwg.mxu0
    %v205 = vmul.f32 %v200, 0.01
    %v206 = vmax.f32 %v200, %v205
    %207 = vst.msk [vmem:[#allocation8] sm:$0xff] %vm44, %v206
    // Predicated region
    $region22: #{tpu_custom_call.1} parent=1 // pred_check
      _
    $region23: #{tpu_custom_call.1} parent=1 // pred_check_branch
      %209 = sbr.rel (0) target = $region25
    $region24: #{tpu_custom_call.1} parent=1 // pred_region
      %s211 = ssub.s32 128, 128
      %212 = vsyncadd [#allocation5], %s211
      %s214 = sshll.u32 [#allocation8], 4
      %s215 = int_to_ptr.vmem [resolvable:$true] %s214
      %217 = dma.vmem_to_hbm [thread:$0]  %s215, 128, %s3, [#allocation5]
    $region25: #{tpu_custom_call.1} parent=1 // pred_fallthru
      _
    // Predicated region
    $region26: #{tpu_custom_call.1} parent=1 // pred_check
      _
    $region27: #{tpu_custom_call.1} parent=1 // pred_check_branch
      %219 = sbr.rel (0) target = $region29
    $region28: #{tpu_custom_call.1} parent=1 // pred_region
      %220 = dma.done [#allocation5], 128
    $region29: #{tpu_custom_call.1} parent=1 // pred_fallthru
      _
    %221 = vsyncpa [#allocation4], 1
    %222 = vsyncpa [#allocation7], 1
    %223 = vsyncpa [#allocation5], 1

</llo_original>
